<compile_context>
chip_gen: v6e
topology: v6e:2x2x1
jax: 0.10.0
libtpu: 0.0.40
codegen_flags: <defaults>
</compile_context>

<pallas_src>
import functools

import jax
import jax.numpy as jnp
from jax import lax
from jax.experimental import pallas as pl
from jax.experimental.pallas import tpu as pltpu


def _round_up(n: int, m: int) -> int:
    return ((n + m - 1) // m) * m


def _round_down(n: int, m: int) -> int:
    return (n // m) * m


def _pad2(a, target_shape):
    pads = tuple((0, t - s) for s, t in zip(a.shape, target_shape))
    if all(p == (0, 0) for p in pads):
        return a
    return jnp.pad(a, pads)


@functools.lru_cache(maxsize=None)
def _tpu_config():
    """(vmem_capacity_bytes, tensorcores_per_chip, has_bf16_vpu) with safe fallbacks."""
    vmem = 64 << 20          # conservative default: v7x per-TensorCore VMEM
    n_tc = 2                 # conservative default: assume dual-TC (keeps both cores fed)
    bf16_vpu = False         # conservative default: v5e has no bf16 VALU path
    try:
        kind = jax.devices()[0].device_kind.lower()
        if ("v5 lite" in kind) or ("v5e" in kind) or ("v5lite" in kind):
            vmem, n_tc, bf16_vpu = 128 << 20, 1, False          # v5e
        elif "v6" in kind:
            vmem, n_tc, bf16_vpu = 128 << 20, 1, True           # v6e
        elif "7" in kind:
            vmem, n_tc, bf16_vpu = 64 << 20, 2, True            # v7x
    except Exception:
        pass
    try:
        vmem = int(pltpu.get_tpu_info().vmem_capacity_bytes)
    except Exception:
        pass
    return vmem, n_tc, bf16_vpu


def _choose_batch_tile(B: int, cap_rows: int, num_tc: int) -> int:
    """Batch-tile rows: big (amortize ~0.35us/step), 128-lane aligned whenever the batch
    is tiled, ~4 parallel steps on dual-TC chips, a single tile on single-TC chips."""
    cap = max(8, cap_rows)
    if B >= 128:
        cap = max(128, _round_down(cap, 128))
        if num_tc >= 2 and B >= 4 * 128:
            # dual-TC (v7x): ~4 "parallel" grid steps load-balance the two TensorCores.
            tb = _round_up(pl.cdiv(B, 4), 128)
        else:
            # single TC: the grid is a serial loop -> one tile if it fits the VMEM budget.
            tb = _round_up(B, 8)
        return min(tb, cap)
    return min(_round_up(B, 8), cap)


def _mlp_kernel(x_ref, w1_ref, b1_ref, w2_ref, b2_ref, w3t_ref, b3_ref, o_ref,
                *, act_dtype):
    mm = w1_ref.dtype                              # bf16 matmul-operand dtype
    # Cast the f32 x tile to bf16 in-kernel (cheap VPU work, hidden under the MXU).
    x = x_ref[...].astype(mm)
    # layer 1: relu(x @ W1 + b1)  — f32 MXU accumulation, epilogue in act_dtype
    h = jnp.dot(x, w1_ref[...], preferred_element_type=jnp.float32)
    h = jnp.maximum(h.astype(act_dtype) + b1_ref[...], 0.0).astype(mm)
    # layer 2: relu(h @ W2 + b2)
    h = jnp.dot(h, w2_ref[...], preferred_element_type=jnp.float32)
    h = jnp.maximum(h.astype(act_dtype) + b2_ref[...], 0.0).astype(mm)
    # output layer, NT form (like q @ k^T): w3_row[1,H2] . h[tb,H2] -> [1,tb].
    # Last-dim/last-dim contraction avoids any transpose of the big h tile and the
    # [1, tb] result row is lane-dense for the store.
    out_t = lax.dot_general(
        w3t_ref[...], h,
        dimension_numbers=(((1,), (1,)), ((), ())),
        preferred_element_type=jnp.float32)
    o_ref[...] = (out_t + b3_ref[0, 0]).astype(o_ref.dtype)


@functools.partial(jax.jit, static_argnames=("block_b", "min_pallas_batch"))
def neural_bandit_forward(x, params, *, block_b=8192, min_pallas_batch=32):
    """Forward pass of NeuralBanditNetwork: relu(relu(x@W1+b1)@W2+b2)@W3+b3.

    x: [B, feature_dim] f32
    params: w1 [F,H1], b1 [1,H1], w2 [H1,H2], b2 [1,H2], w3 [H2,1], b3 [1,1]
    returns: [B, 1] f32
    """
    w1, b1 = params["w1"], params["b1"]
    w2, b2 = params["w2"], params["b2"]
    w3, b3 = params["w3"], params["b3"]

    B, F = x.shape
    H1, H2 = w1.shape[1], w2.shape[1]

    if B < min_pallas_batch:
        # Tiny batches: pallas_call fixed cost exceeds the work — plain jnp path.
        h = jnp.maximum(x @ w1 + b1, 0.0)
        h = jnp.maximum(h @ w2 + b2, 0.0)
        return h @ w3 + b3

    vmem_cap, num_tc, bf16_vpu = _tpu_config()
    mm_dtype = jnp.bfloat16                                   # MXU operands (f32 accumulate)
    act_dtype = jnp.bfloat16 if bf16_vpu else jnp.float32     # epilogue dtype (f32 on v5e)
    act_bytes = jnp.dtype(act_dtype).itemsize

    # Zero-pad hidden dims to the 128-lane granule: padded units have zero weights AND
    # zero bias, so they are exactly 0 through ReLU and contribute nothing downstream.
    # Weights are tiny; only x stays untouched in the wrapper.
    H1p, H2p = _round_up(H1, 128), _round_up(H2, 128)
    w1p = _pad2(w1, (F, H1p)).astype(mm_dtype)
    b1p = _pad2(b1, (1, H1p)).astype(act_dtype)
    w2p = _pad2(w2, (H1p, H2p)).astype(mm_dtype)
    b2p = _pad2(b2, (1, H2p)).astype(act_dtype)
    w3t = _pad2(w3, (H2p, 1)).T.astype(mm_dtype)              # [1, H2p] row for NT matmul
    b3s = b3.reshape(1, 1).astype(jnp.float32)                # scalar, lives in SMEM

    # VMEM-budgeted, generation-aware batch tile.
    row_bytes = (2 * F * 4                                    # double-buffered f32 x tile
                 + 2 * F                                      # in-kernel bf16 copy of x
                 + (H1p + H2p) * (4 + act_bytes + 2)          # f32 acc + epilogue + bf16 h
                 + 2 * 4)                                     # double-buffered f32 out row
    fixed_bytes = 2 * ((F * H1p + H1p * H2p + H2p) * 2
                       + (H1p + H2p) * act_bytes) + (2 << 20)
    tile_budget = max(4 << 20, min(int(vmem_cap * 0.4), 40 << 20))
    cap_rows = min(block_b, max(8, (tile_budget - fixed_bytes) // row_bytes))
    tb = _choose_batch_tile(B, cap_rows, num_tc)
    G = pl.cdiv(B, tb)
    vmem_limit = int(min(vmem_cap * 3 // 4, 96 << 20))

    flops = 2 * B * (F * H1p + H1p * H2p + H2p)
    bytes_accessed = (B * F * 4 + B * 4                       # f32 x in, f32 out
                      + (F * H1p + H1p * H2p + H2p) * 2       # bf16 weights
                      + (H1p + H2p) * act_bytes + 4)          # biases

    def whole(shape):
        return pl.BlockSpec(shape, lambda i: (0,) * len(shape))

    out = pl.pallas_call(
        functools.partial(_mlp_kernel, act_dtype=act_dtype),
        out_shape=jax.ShapeDtypeStruct((1, G * tb), jnp.float32),
        grid_spec=pltpu.PrefetchScalarGridSpec(
            num_scalar_prefetch=0,
            grid=(G,),
            in_specs=[
                pl.BlockSpec((tb, F), lambda i: (i, 0)),      # x tile (ragged last tile ok)
                whole((F, H1p)), whole((1, H1p)),             # layer 1 (resident)
                whole((H1p, H2p)), whole((1, H2p)),           # layer 2 (resident)
                whole((1, H2p)),                              # output-layer weight row
                pl.BlockSpec(memory_space=pltpu.MemorySpace.SMEM),   # b3 scalar in SMEM
            ],
            # lane-dense output: batch rows live on the lane axis
            out_specs=pl.BlockSpec((1, tb), lambda i: (0, i)),
        ),
        compiler_params=pltpu.CompilerParams(
            dimension_semantics=("parallel",),
            vmem_limit_bytes=vmem_limit,
        ),
        cost_estimate=pl.CostEstimate(
            flops=flops, transcendentals=0, bytes_accessed=bytes_accessed),
    )(x, w1p, b1p, w2p, b2p, w3t, b3s)

    # (1, G*tb) lane-dense row -> (B, 1); drops the garbage rows of the ragged last tile.
    return out[0, :B][:, None]


def init_params(key, feature_dim, hidden_dims=(100, 100)):
    """Deterministic init mirroring nn.Linear's U(-1/sqrt(in), 1/sqrt(in))."""
    dims = [feature_dim] + list(hidden_dims) + [1]
    params = {}
    for idx, (d_in, d_out) in enumerate(zip(dims[:-1], dims[1:]), start=1):
        key, kw, kb = jax.random.split(key, 3)
        bound = 1.0 / float(d_in) ** 0.5
        params[f"w{idx}"] = jax.random.uniform(
            kw, (d_in, d_out), jnp.float32, -bound, bound)
        params[f"b{idx}"] = jax.random.uniform(
            kb, (1, d_out), jnp.float32, -bound, bound)
    return params


def reference_forward(x, params, act_dtype=jnp.float32):
    """Pure-jnp reference mirroring the kernel's bf16-matmul / act_dtype-epilogue math."""
    mm = jnp.bfloat16
    h = jnp.dot(x.astype(mm), params["w1"].astype(mm),
                preferred_element_type=jnp.float32)
    h = jnp.maximum(h.astype(act_dtype) + params["b1"].astype(act_dtype), 0.0).astype(mm)
    h = jnp.dot(h, params["w2"].astype(mm), preferred_element_type=jnp.float32)
    h = jnp.maximum(h.astype(act_dtype) + params["b2"].astype(act_dtype), 0.0).astype(mm)
    y = jnp.dot(h, params["w3"].astype(mm), preferred_element_type=jnp.float32)
    return y + params["b3"]


def reference_forward_f32(x, params):
    h = jnp.maximum(x @ params["w1"] + params["b1"], 0.0)
    h = jnp.maximum(h @ params["w2"] + params["b2"], 0.0)
    return h @ params["w3"] + params["b3"]


if __name__ == "__main__":
    key = jax.random.PRNGKey(0)
    k_params, k_x1, k_x2 = jax.random.split(key, 3)

    feature_dim, hidden_dims = 32, (100, 100)      # module-default hidden dims
    params = init_params(k_params, feature_dim, hidden_dims)

    _, _, _bf16_vpu = _tpu_config()
    act_dtype = jnp.bfloat16 if _bf16_vpu else jnp.float32

    # Two cases: ragged single-tile batch and a batch that tiles on dual-TC chips.
    for batch, kx in ((200, k_x1), (640, k_x2)):
        x = jax.random.normal(kx, (batch, feature_dim), jnp.float32)
        y = jax.block_until_ready(neural_bandit_forward(x, params))
        assert y.shape == (batch, 1), y.shape

        y_ref = reference_forward(x, params, act_dtype)   # precision-matched reference
        assert jnp.allclose(y, y_ref, atol=2e-3, rtol=2e-3), (
            f"B={batch}: max err vs matched ref {jnp.max(jnp.abs(y - y_ref))}")

        y_f32 = reference_forward_f32(x, params)          # loose sanity vs full-f32 math
        assert jnp.allclose(y, y_f32, atol=5e-2, rtol=5e-2), (
            f"B={batch}: max err vs f32 ref {jnp.max(jnp.abs(y - y_f32))}")

    print("KERNEL_OK")
</pallas_src>

<mosaic_0001>
module attributes {stable_mosaic.version = 11 : i64} {
  func.func @_mlp_kernel(%arg0: i32, %arg1: memref<200x32xf32, #tpu.memory_space<vmem>>, %arg2: memref<32x128xbf16, #tpu.memory_space<vmem>>, %arg3: memref<1x128xf32, #tpu.memory_space<vmem>>, %arg4: memref<128x128xbf16, #tpu.memory_space<vmem>>, %arg5: memref<1x128xf32, #tpu.memory_space<vmem>>, %arg6: memref<1x128xbf16, #tpu.memory_space<vmem>>, %arg7: memref<1x1xf32, #tpu.memory_space<smem>>, %arg8: memref<1x200xf32, #tpu.memory_space<vmem>>) attributes {dimension_semantics = [#tpu.dimension_semantics<parallel>], iteration_bounds = array<i64: 1>, scalar_prefetch = 0 : i64, scratch_operands = 0 : i64, tpu.core_type = #tpu.core_type<tc>, window_params = [{transform_indices = @transform_0, window_bounds = array<i64: 200, 32>}, {pipeline_mode = #tpu.pipeline_mode<synchronous>, transform_indices = @transform_1, window_bounds = array<i64: 32, 128>}, {pipeline_mode = #tpu.pipeline_mode<synchronous>, transform_indices = @transform_2, window_bounds = array<i64: 1, 128>}, {pipeline_mode = #tpu.pipeline_mode<synchronous>, transform_indices = @transform_3, window_bounds = array<i64: 128, 128>}, {pipeline_mode = #tpu.pipeline_mode<synchronous>, transform_indices = @transform_4, window_bounds = array<i64: 1, 128>}, {pipeline_mode = #tpu.pipeline_mode<synchronous>, transform_indices = @transform_5, window_bounds = array<i64: 1, 128>}, {transform_indices = @transform_6, window_bounds = array<i64: 1, 1>}, {transform_indices = @transform_7, window_bounds = array<i64: 1, 200>}]} {
    %c0 = arith.constant 0 : index
    %c0_0 = arith.constant 0 : index
    %0 = vector.load %arg1[%c0, %c0_0] : memref<200x32xf32, #tpu.memory_space<vmem>>, vector<200x32xf32>
    %1 = arith.truncf %0 : vector<200x32xf32> to vector<200x32xbf16>
    %c0_1 = arith.constant 0 : index
    %c0_2 = arith.constant 0 : index
    %2 = vector.load %arg2[%c0_1, %c0_2] : memref<32x128xbf16, #tpu.memory_space<vmem>>, vector<32x128xbf16>
    %cst = arith.constant dense<0.000000e+00> : vector<200x128xf32>
    %3 = tpu.matmul %1, %2, %cst {dimension_numbers = #tpu.dot_dimension_numbers<[1], [0], [0], [1], [0, 0, 1, 1], [], []>} : vector<200x32xbf16>, vector<32x128xbf16>, vector<200x128xf32> -> vector<200x128xf32>
    %c0_3 = arith.constant 0 : index
    %c0_4 = arith.constant 0 : index
    %4 = vector.load %arg3[%c0_3, %c0_4] : memref<1x128xf32, #tpu.memory_space<vmem>>, vector<1x128xf32>
    %5 = vector.broadcast %4 : vector<1x128xf32> to vector<200x128xf32>
    %6 = arith.addf %3, %5 : vector<200x128xf32>
    %cst_5 = arith.constant 0.000000e+00 : f32
    %7 = vector.broadcast %cst_5 : f32 to vector<200x128xf32>
    %8 = arith.maximumf %6, %7 : vector<200x128xf32>
    %9 = arith.truncf %8 : vector<200x128xf32> to vector<200x128xbf16>
    %c0_6 = arith.constant 0 : index
    %c0_7 = arith.constant 0 : index
    %10 = vector.load %arg4[%c0_6, %c0_7] : memref<128x128xbf16, #tpu.memory_space<vmem>>, vector<128x128xbf16>
    %cst_8 = arith.constant dense<0.000000e+00> : vector<200x128xf32>
    %11 = tpu.matmul %9, %10, %cst_8 {dimension_numbers = #tpu.dot_dimension_numbers<[1], [0], [0], [1], [0, 0, 1, 1], [], []>} : vector<200x128xbf16>, vector<128x128xbf16>, vector<200x128xf32> -> vector<200x128xf32>
    %c0_9 = arith.constant 0 : index
    %c0_10 = arith.constant 0 : index
    %12 = vector.load %arg5[%c0_9, %c0_10] : memref<1x128xf32, #tpu.memory_space<vmem>>, vector<1x128xf32>
    %13 = vector.broadcast %12 : vector<1x128xf32> to vector<200x128xf32>
    %14 = arith.addf %11, %13 : vector<200x128xf32>
    %cst_11 = arith.constant 0.000000e+00 : f32
    %15 = vector.broadcast %cst_11 : f32 to vector<200x128xf32>
    %16 = arith.maximumf %14, %15 : vector<200x128xf32>
    %17 = arith.truncf %16 : vector<200x128xf32> to vector<200x128xbf16>
    %c0_12 = arith.constant 0 : index
    %c0_13 = arith.constant 0 : index
    %18 = vector.load %arg6[%c0_12, %c0_13] : memref<1x128xbf16, #tpu.memory_space<vmem>>, vector<1x128xbf16>
    %cst_14 = arith.constant dense<0.000000e+00> : vector<1x200xf32>
    %19 = tpu.matmul %18, %17, %cst_14 {dimension_numbers = #tpu.dot_dimension_numbers<[1], [1], [0], [0], [0, 0, 1, 0], [], []>} : vector<1x128xbf16>, vector<200x128xbf16>, vector<1x200xf32> -> vector<1x200xf32>
    %c0_15 = arith.constant 0 : index
    %c0_16 = arith.constant 0 : index
    %20 = memref.load %arg7[%c0_15, %c0_16] : memref<1x1xf32, #tpu.memory_space<smem>>
    %21 = vector.broadcast %20 : f32 to vector<1x200xf32>
    %22 = arith.addf %19, %21 : vector<1x200xf32>
    %c0_17 = arith.constant 0 : index
    %c0_18 = arith.constant 0 : index
    %23 = vector.load %arg8[%c0_17, %c0_18] : memref<1x200xf32, #tpu.memory_space<vmem>>, vector<1x200xf32>
    tpu.vector_store %arg8[%c0_17, %c0_18], %22 {strides = array<i32>} : memref<1x200xf32, #tpu.memory_space<vmem>>, vector<1x200xf32>,
    return
  }
  func.func @transform_0(%arg0: i32) -> (i32, i32) {
    %c0_i32 = arith.constant 0 : i32
    %c0_i32_0 = arith.constant 0 : i32
    return %arg0, %c0_i32 : i32, i32
  }
  func.func @transform_1(%arg0: i32) -> (i32, i32) {
    %c0_i32 = arith.constant 0 : i32
    %c0_i32_0 = arith.constant 0 : i32
    %c0_i32_1 = arith.constant 0 : i32
    return %c0_i32, %c0_i32_0 : i32, i32
  }
  func.func @transform_2(%arg0: i32) -> (i32, i32) {
    %c0_i32 = arith.constant 0 : i32
    %c0_i32_0 = arith.constant 0 : i32
    %c0_i32_1 = arith.constant 0 : i32
    return %c0_i32, %c0_i32_0 : i32, i32
  }
  func.func @transform_3(%arg0: i32) -> (i32, i32) {
    %c0_i32 = arith.constant 0 : i32
    %c0_i32_0 = arith.constant 0 : i32
    %c0_i32_1 = arith.constant 0 : i32
    return %c0_i32, %c0_i32_0 : i32, i32
  }
  func.func @transform_4(%arg0: i32) -> (i32, i32) {
    %c0_i32 = arith.constant 0 : i32
    %c0_i32_0 = arith.constant 0 : i32
    %c0_i32_1 = arith.constant 0 : i32
    return %c0_i32, %c0_i32_0 : i32, i32
  }
  func.func @transform_5(%arg0: i32) -> (i32, i32) {
    %c0_i32 = arith.constant 0 : i32
    %c0_i32_0 = arith.constant 0 : i32
    %c0_i32_1 = arith.constant 0 : i32
    return %c0_i32, %c0_i32_0 : i32, i32
  }
  func.func @transform_6(%arg0: i32) -> (i32, i32) {
    %c0_i32 = arith.constant 0 : i32
    %c0_i32_0 = arith.constant 0 : i32
    %c0_i32_1 = arith.constant 0 : i32
    return %c0_i32, %c0_i32_0 : i32, i32
  }
  func.func @transform_7(%arg0: i32) -> (i32, i32) {
    %c0_i32 = arith.constant 0 : i32
    %c0_i32_0 = arith.constant 0 : i32
    return %c0_i32, %arg0 : i32, i32
  }
}

</mosaic_0001>

<llo_original>
// kernel: neural_bandit_forward.1
$region0: #{neural_bandit_forward.1}
  #allocation0 [shape = 'u32[]', space=smem, size = 0x4, offset = 0x4, fixed_abs, tag = 'smem constant byte address 0x4 - core index']
  #allocation1 [shape = 'u32[144,128]{1,0:T(1,128)}', space=vmem, size = 0x12000, scoped, tag = 'internal scratch']
  #allocation2 [shape = 'f32[1,1]{1,0:T(1,128)S(6)}', space=smem, size = 0x200, scoped, tag = 'scoped memory for neural_bandit_forward.1']
  %s0 = inlined_call_operand.vmem [shape: f32[200,32], index: 0, kind: input, shape index: {}]
  %s1 = inlined_call_operand.vmem [shape: bf16[32,128], index: 1, kind: input, shape index: {}]
  %s2 = inlined_call_operand.vmem [shape: f32[1,128], index: 2, kind: input, shape index: {}]
  %s3 = inlined_call_operand.vmem [shape: bf16[128,128], index: 3, kind: input, shape index: {}]
  %s4 = inlined_call_operand.vmem [shape: f32[1,128], index: 4, kind: input, shape index: {}]
  %s5 = inlined_call_operand.vmem [shape: bf16[1,128], index: 5, kind: input, shape index: {}]
  %s6 = inlined_call_operand.<no memory space> [shape: f32[1,1], index: 6, kind: input, shape index: {}]
  %s7 = inlined_call_operand.hbm [shape: f32[1,200], index: 7, kind: output, shape index: {}]
  %s8 = sld [smem:[#allocation0]]
  $region38: #{neural_bandit_forward.1} parent=0
    _
  %s10 = ssub.s32 1, %s8
  %s11 = scalar_select 0, %s10, %s8
  %12 = sst [smem:[#allocation2]] %s6
  $region1: #{neural_bandit_forward.1} parent=0
    #allocation3 [shape = 'u8[1024]{0}', space=vmem, size = 0x400, scoped, tag = 'output window, operand 0, single buffered']
    #allocation4 [shape = 's32[1]{0}', space=sflag, size = 0x4, scoped, tag = 'scoped memory for neural_bandit_forward.1']
    %13 = vsyncpa [#allocation4], 0
    // Predicated region
    $region2: #{neural_bandit_forward.1} parent=1 // pred_check
      _
    $region3: #{neural_bandit_forward.1} parent=1 // pred_check_branch
      %15 = sbr.rel (0) target = $region5
    $region4: #{neural_bandit_forward.1} parent=1 // pred_region
      _
    $region5: #{neural_bandit_forward.1} parent=1 // pred_fallthru
      _
    // Predicated region
    $region6: #{neural_bandit_forward.1} parent=1 // pred_check
      _
    $region7: #{neural_bandit_forward.1} parent=1 // pred_check_branch
      %17 = sbr.rel (0) target = $region9
    $region8: #{neural_bandit_forward.1} parent=1 // pred_region
      _
    $region9: #{neural_bandit_forward.1} parent=1 // pred_fallthru
      _
    // Predicated region
    $region10: #{neural_bandit_forward.1} parent=1 // pred_check
      _
    $region11: #{neural_bandit_forward.1} parent=1 // pred_check_branch
      %19 = sbr.rel (0) target = $region13
    $region12: #{neural_bandit_forward.1} parent=1 // pred_region
      _
    $region13: #{neural_bandit_forward.1} parent=1 // pred_fallthru
      _
    // Predicated region
    $region14: #{neural_bandit_forward.1} parent=1 // pred_check
      _
    $region15: #{neural_bandit_forward.1} parent=1 // pred_check_branch
      %21 = sbr.rel (0) target = $region17
    $region16: #{neural_bandit_forward.1} parent=1 // pred_region
      _
    $region17: #{neural_bandit_forward.1} parent=1 // pred_fallthru
      _
    // Predicated region
    $region18: #{neural_bandit_forward.1} parent=1 // pred_check
      _
    $region19: #{neural_bandit_forward.1} parent=1 // pred_check_branch
      %23 = sbr.rel (0) target = $region21
    $region20: #{neural_bandit_forward.1} parent=1 // pred_region
      _
    $region21: #{neural_bandit_forward.1} parent=1 // pred_fallthru
      _
    // Predicated region
    $region22: #{neural_bandit_forward.1} parent=1 // pred_check
      _
    $region23: #{neural_bandit_forward.1} parent=1 // pred_check_branch
      %25 = sbr.rel (0) target = $region25
    $region24: #{neural_bandit_forward.1} parent=1 // pred_region
      _
    $region25: #{neural_bandit_forward.1} parent=1 // pred_fallthru
      _
    // Predicated region
    $region26: #{neural_bandit_forward.1} parent=1 // pred_check
      _
    $region27: #{neural_bandit_forward.1} parent=1 // pred_check_branch
      %27 = sbr.rel (0) target = $region29
    $region28: #{neural_bandit_forward.1} parent=1 // pred_region
      _
    $region29: #{neural_bandit_forward.1} parent=1 // pred_fallthru
      _
    %v29 = vld [vmem:[%s0] sm:$0xff]
    %v30 = vld [vmem:[%s0 + $0x8] sm:$0xff]
    %v31 = vld [vmem:[%s0 + $0x10] sm:$0xff]
    %v32 = vld [vmem:[%s0 + $0x18] sm:$0xff]
    %v33 = vld [vmem:[%s0 + $0x20] sm:$0xff]
    %v34 = vld [vmem:[%s0 + $0x28] sm:$0xff]
    %v35 = vld [vmem:[%s0 + $0x30] sm:$0xff]
    %v36 = vld [vmem:[%s0 + $0x38] sm:$0xff]
    %v37 = vld [vmem:[%s0 + $0x40] sm:$0xff]
    %v38 = vld [vmem:[%s0 + $0x48] sm:$0xff]
    %v39 = vld [vmem:[%s0 + $0x50] sm:$0xff]
    %v40 = vld [vmem:[%s0 + $0x58] sm:$0xff]
    %v41 = vld [vmem:[%s0 + $0x60] sm:$0xff]
    %v42 = vld [vmem:[%s0 + $0x68] sm:$0xff]
    %v43 = vld [vmem:[%s0 + $0x70] sm:$0xff]
    %v44 = vld [vmem:[%s0 + $0x78] sm:$0xff]
    %v45 = vld [vmem:[%s0 + $0x80] sm:$0xff]
    %v46 = vld [vmem:[%s0 + $0x88] sm:$0xff]
    %v47 = vld [vmem:[%s0 + $0x90] sm:$0xff]
    %v48 = vld [vmem:[%s0 + $0x98] sm:$0xff]
    %v49 = vld [vmem:[%s0 + $0xa0] sm:$0xff]
    %v50 = vld [vmem:[%s0 + $0xa8] sm:$0xff]
    %v51 = vld [vmem:[%s0 + $0xb0] sm:$0xff]
    %v52 = vld [vmem:[%s0 + $0xb8] sm:$0xff]
    %v53 = vld [vmem:[%s0 + $0xc0] sm:$0xff]
    %v54 = vpack.c.bf16 %v30, %v29
    %v55 = vpack.c.bf16 %v32, %v31
    %v56 = vpack.c.bf16 %v34, %v33
    %v57 = vpack.c.bf16 %v36, %v35
    %v58 = vpack.c.bf16 %v38, %v37
    %v59 = vpack.c.bf16 %v40, %v39
    %v60 = vpack.c.bf16 %v42, %v41
    %v61 = vpack.c.bf16 %v44, %v43
    %v62 = vpack.c.bf16 %v46, %v45
    %v63 = vpack.c.bf16 %v48, %v47
    %v64 = vpack.c.bf16 %v50, %v49
    %v65 = vpack.c.bf16 %v52, %v51
    %v66 = vpack.c.bf16 %v53, %v53
    %v67 = vld [vmem:[%s1] sm:$0xf]
    %v68 = vld [vmem:[%s1 + $0x4] sm:$0xf]
    %v69 = vld [vmem:[%s1 + $0x8] sm:$0xf]
    %v70 = vld [vmem:[%s1 + $0xc] sm:$0xf]
    %v71 = vld [vmem:[%s2] sm:$0x1]
    %v73 = vlaneseq
    %v74 = vshrl.u32 %v73, 7
    %v75 = vsub.s32 0, %v74
    %v76 = vrot.slane %v71, %v75
    %v82 = vunpack.c.l.b16 %v67
    %v83 = vunpack.c.l.b16 %v68
    %v84 = vunpack.c.l.b16 %v69
    %v85 = vunpack.c.l.b16 %v70
    %v86 = vpack.c.b16 %v83, %v82
    %v87 = vpack.c.b16 %v85, %v84
    %vm90 = vcmask 261120
    %v92 = vsel %vm90, %v54, 0
    %v95 = vsel %vm90, %v55, 0
    %v98 = vsel %vm90, %v56, 0
    %v101 = vsel %vm90, %v57, 0
    %v104 = vsel %vm90, %v58, 0
    %v107 = vsel %vm90, %v59, 0
    %v110 = vsel %vm90, %v60, 0
    %v113 = vsel %vm90, %v61, 0
    %v116 = vsel %vm90, %v62, 0
    %v119 = vsel %vm90, %v63, 0
    %v122 = vsel %vm90, %v64, 0
    %v125 = vsel %vm90, %v65, 0
    %v128 = vsel %vm90, %v66, 0
    %130 = vmatprep.subr.bf16.mxu0 0
    %131 = vmatpush1.bf16.msra.mxu0 0
    %132 = vmatprep.subr.bf16.mxu0 0
    %133 = vmatpush1.bf16.msra.mxu0 0
    %134 = vmatprep.subr.bf16.mxu0 0
    %135 = vmatpush1.bf16.msra.mxu0 0
    %136 = vmatprep.subr.bf16.mxu0 0
    %137 = vmatpush1.bf16.msra.mxu0 0
    %138 = vmatprep.subr.bf16.mxu0 0
    %139 = vmatpush1.bf16.msra.mxu0 0
    %140 = vmatprep.subr.bf16.mxu0 0
    %141 = vmatpush1.bf16.msra.mxu0 0
    %142 = vmatprep.subr.bf16.mxu0 0
    %143 = vmatpush1.bf16.msra.mxu0 %v87
    %144 = vmatprep.subr.bf16.mxu0 0
    %145 = vmatpush1.bf16.msra.mxu0 %v86
    %146 = vmatprep.subr.bf16.mxu0 0
    %147 = vmatpush2.bf16.msra.mxu0 0
    %148 = vmatprep.subr.bf16.mxu0 0
    %149 = vmatpush2.bf16.msra.mxu0 0
    %150 = vmatprep.subr.bf16.mxu0 0
    %151 = vmatpush2.bf16.msra.mxu0 0
    %152 = vmatprep.subr.bf16.mxu0 0
    %153 = vmatpush2.bf16.msra.mxu0 0
    %154 = vmatprep.subr.bf16.mxu0 0
    %155 = vmatpush2.bf16.msra.mxu0 0
    %156 = vmatprep.subr.bf16.mxu0 0
    %157 = vmatpush2.bf16.msra.mxu0 0
    %158 = vmatprep.subr.bf16.mxu0 0
    %159 = vmatpush2.bf16.msra.mxu0 0
    %160 = vmatprep.subr.bf16.mxu0 0
    %161 = vmatpush2.bf16.msra.mxu0 0
    %162 = vmatprep.mubr.bf16.mxu0 0
    %163 = vmatmul.mubr.bf16.gmra.mxu0 %v92
    %v164 = vpop.f32.mrf.mxu0
    %v165 = vadd.f32 %v76, %v164
    %v166 = vpop.f32.mrf.mxu0
    %v167 = vpop.f32.mrf.mxu0
    %v168 = vadd.f32 %v76, %v167
    %v169 = vpop.f32.mrf.mxu0
    %170 = vmatprep.mubr.bf16.mxu0 0
    %171 = vmatmul.mubr.bf16.gmra.mxu0 %v95
    %v172 = vpop.f32.mrf.mxu0
    %v173 = vadd.f32 %v76, %v172
    %v174 = vpop.f32.mrf.mxu0
    %v175 = vpop.f32.mrf.mxu0
    %v176 = vadd.f32 %v76, %v175
    %v177 = vpop.f32.mrf.mxu0
    %178 = vmatprep.mubr.bf16.mxu0 0
    %179 = vmatmul.mubr.bf16.gmra.mxu0 %v98
    %v180 = vpop.f32.mrf.mxu0
    %v181 = vadd.f32 %v76, %v180
    %v182 = vpop.f32.mrf.mxu0
    %v183 = vpop.f32.mrf.mxu0
    %v184 = vadd.f32 %v76, %v183
    %v185 = vpop.f32.mrf.mxu0
    %186 = vmatprep.mubr.bf16.mxu0 0
    %187 = vmatmul.mubr.bf16.gmra.mxu0 %v101
    %v188 = vpop.f32.mrf.mxu0
    %v189 = vadd.f32 %v76, %v188
    %v190 = vpop.f32.mrf.mxu0
    %v191 = vpop.f32.mrf.mxu0
    %v192 = vadd.f32 %v76, %v191
    %v193 = vpop.f32.mrf.mxu0
    %194 = vmatprep.mubr.bf16.mxu0 0
    %195 = vmatmul.mubr.bf16.gmra.mxu0 %v104
    %v196 = vpop.f32.mrf.mxu0
    %v197 = vadd.f32 %v76, %v196
    %v198 = vpop.f32.mrf.mxu0
    %v199 = vpop.f32.mrf.mxu0
    %v200 = vadd.f32 %v76, %v199
    %v201 = vpop.f32.mrf.mxu0
    %202 = vmatprep.mubr.bf16.mxu0 0
    %203 = vmatmul.mubr.bf16.gmra.mxu0 %v107
    %v204 = vpop.f32.mrf.mxu0
    %v205 = vadd.f32 %v76, %v204
    %v206 = vpop.f32.mrf.mxu0
    %v207 = vpop.f32.mrf.mxu0
    %v208 = vadd.f32 %v76, %v207
    %v209 = vpop.f32.mrf.mxu0
    %210 = vmatprep.mubr.bf16.mxu0 0
    %211 = vmatmul.mubr.bf16.gmra.mxu0 %v110
    %v212 = vpop.f32.mrf.mxu0
    %v213 = vadd.f32 %v76, %v212
    %v214 = vpop.f32.mrf.mxu0
    %v215 = vpop.f32.mrf.mxu0
    %v216 = vadd.f32 %v76, %v215
    %v217 = vpop.f32.mrf.mxu0
    %218 = vmatprep.mubr.bf16.mxu0 0
    %219 = vmatmul.mubr.bf16.gmra.mxu0 %v113
    %v220 = vpop.f32.mrf.mxu0
    %v221 = vadd.f32 %v76, %v220
    %v222 = vpop.f32.mrf.mxu0
    %v223 = vpop.f32.mrf.mxu0
    %v224 = vadd.f32 %v76, %v223
    %v225 = vpop.f32.mrf.mxu0
    %226 = vmatprep.mubr.bf16.mxu0 0
    %227 = vmatmul.mubr.bf16.gmra.mxu0 %v116
    %v228 = vpop.f32.mrf.mxu0
    %v229 = vadd.f32 %v76, %v228
    %v230 = vpop.f32.mrf.mxu0
    %v231 = vpop.f32.mrf.mxu0
    %v232 = vadd.f32 %v76, %v231
    %v233 = vpop.f32.mrf.mxu0
    %234 = vmatprep.mubr.bf16.mxu0 0
    %235 = vmatmul.mubr.bf16.gmra.mxu0 %v119
    %v236 = vpop.f32.mrf.mxu0
    %v237 = vadd.f32 %v76, %v236
    %v238 = vpop.f32.mrf.mxu0
    %v239 = vpop.f32.mrf.mxu0
    %v240 = vadd.f32 %v76, %v239
    %v241 = vpop.f32.mrf.mxu0
    %242 = vmatprep.mubr.bf16.mxu0 0
    %243 = vmatmul.mubr.bf16.gmra.mxu0 %v122
    %v244 = vpop.f32.mrf.mxu0
    %v245 = vadd.f32 %v76, %v244
    %v246 = vpop.f32.mrf.mxu0
    %v247 = vpop.f32.mrf.mxu0
    %v248 = vadd.f32 %v76, %v247
    %v249 = vpop.f32.mrf.mxu0
    %250 = vmatprep.mubr.bf16.mxu0 0
    %251 = vmatmul.mubr.bf16.gmra.mxu0 %v125
    %v252 = vpop.f32.mrf.mxu0
    %v253 = vadd.f32 %v76, %v252
    %v254 = vpop.f32.mrf.mxu0
    %v255 = vpop.f32.mrf.mxu0
    %v256 = vadd.f32 %v76, %v255
    %v257 = vpop.f32.mrf.mxu0
    %258 = vmatprep.mubr.bf16.mxu0 0
    %259 = vmatmul.mubr.bf16.gmra.mxu0 %v128
    %v260 = vpop.f32.mrf.mxu0
    %v261 = vadd.f32 %v76, %v260
    %v262 = vpop.f32.mrf.mxu0
    %v263 = vpop.f32.mrf.mxu0
    %v264 = vpop.f32.mrf.mxu0
    %265 = vdwg.mxu0
    %v266 = vmax.f32 %v165, 0.0
    %v267 = vmax.f32 %v168, 0.0
    %v268 = vmax.f32 %v173, 0.0
    %v269 = vmax.f32 %v176, 0.0
    %v270 = vmax.f32 %v181, 0.0
    %v271 = vmax.f32 %v184, 0.0
    %v272 = vmax.f32 %v189, 0.0
    %v273 = vmax.f32 %v192, 0.0
    %v274 = vmax.f32 %v197, 0.0
    %v275 = vmax.f32 %v200, 0.0
    %v276 = vmax.f32 %v205, 0.0
    %v277 = vmax.f32 %v208, 0.0
    %v278 = vmax.f32 %v213, 0.0
    %v279 = vmax.f32 %v216, 0.0
    %v280 = vmax.f32 %v221, 0.0
    %v281 = vmax.f32 %v224, 0.0
    %v282 = vmax.f32 %v229, 0.0
    %v283 = vmax.f32 %v232, 0.0
    %v284 = vmax.f32 %v237, 0.0
    %v285 = vmax.f32 %v240, 0.0
    %v286 = vmax.f32 %v245, 0.0
    %v287 = vmax.f32 %v248, 0.0
    %v288 = vmax.f32 %v253, 0.0
    %v289 = vmax.f32 %v256, 0.0
    %v290 = vmax.f32 %v261, 0.0
    %v291 = vpack.c.bf16 %v267, %v266
    %v292 = vpack.c.bf16 %v269, %v268
    %v293 = vpack.c.bf16 %v271, %v270
    %v294 = vpack.c.bf16 %v273, %v272
    %v295 = vpack.c.bf16 %v275, %v274
    %v296 = vpack.c.bf16 %v277, %v276
    %v297 = vpack.c.bf16 %v279, %v278
    %v298 = vpack.c.bf16 %v281, %v280
    %v299 = vpack.c.bf16 %v283, %v282
    %v300 = vpack.c.bf16 %v285, %v284
    %v301 = vpack.c.bf16 %v287, %v286
    %v302 = vpack.c.bf16 %v289, %v288
    %v303 = vpack.c.bf16 %v290, %v290
    %v304 = vld [vmem:[%s3] sm:$0xf]
    %v305 = vld [vmem:[%s3 + $0x4] sm:$0xf]
    %v306 = vld [vmem:[%s3 + $0x8] sm:$0xf]
    %v307 = vld [vmem:[%s3 + $0xc] sm:$0xf]
    %v308 = vld [vmem:[%s3 + $0x10] sm:$0xf]
    %v309 = vld [vmem:[%s3 + $0x14] sm:$0xf]
    %v310 = vld [vmem:[%s3 + $0x18] sm:$0xf]
    %v311 = vld [vmem:[%s3 + $0x1c] sm:$0xf]
    %v312 = vld [vmem:[%s3 + $0x20] sm:$0xf]
    %v313 = vld [vmem:[%s3 + $0x24] sm:$0xf]
    %v314 = vld [vmem:[%s3 + $0x28] sm:$0xf]
    %v315 = vld [vmem:[%s3 + $0x2c] sm:$0xf]
    %v316 = vld [vmem:[%s3 + $0x30] sm:$0xf]
    %v317 = vld [vmem:[%s3 + $0x34] sm:$0xf]
    %v318 = vld [vmem:[%s3 + $0x38] sm:$0xf]
    %v319 = vld [vmem:[%s3 + $0x3c] sm:$0xf]
    %v320 = vld [vmem:[%s4] sm:$0x1]
    %v322 = vlaneseq
    %v323 = vshrl.u32 %v322, 7
    %v324 = vsub.s32 0, %v323
    %v325 = vrot.slane %v320, %v324
    %v343 = vunpack.c.l.b16 %v304
    %v344 = vunpack.c.l.b16 %v305
    %v345 = vunpack.c.l.b16 %v306
    %v346 = vunpack.c.l.b16 %v307
    %v347 = vunpack.c.l.b16 %v308
    %v348 = vunpack.c.l.b16 %v309
    %v349 = vunpack.c.l.b16 %v310
    %v350 = vunpack.c.l.b16 %v311
    %v351 = vunpack.c.l.b16 %v312
    %v352 = vunpack.c.l.b16 %v313
    %v353 = vunpack.c.l.b16 %v314
    %v354 = vunpack.c.l.b16 %v315
    %v355 = vunpack.c.l.b16 %v316
    %v356 = vunpack.c.l.b16 %v317
    %v357 = vunpack.c.l.b16 %v318
    %v358 = vunpack.c.l.b16 %v319
    %v359 = vpack.c.b16 %v344, %v343
    %v360 = vpack.c.b16 %v346, %v345
    %v361 = vpack.c.b16 %v348, %v347
    %v362 = vpack.c.b16 %v350, %v349
    %v363 = vpack.c.b16 %v352, %v351
    %v364 = vpack.c.b16 %v354, %v353
    %v365 = vpack.c.b16 %v356, %v355
    %v366 = vpack.c.b16 %v358, %v357
    %375 = vmatprep.subr.bf16.mxu0 0
    %376 = vmatpush1.bf16.msra.mxu0 %v366
    %377 = vmatprep.subr.bf16.mxu0 0
    %378 = vmatpush1.bf16.msra.mxu0 %v365
    %379 = vmatprep.subr.bf16.mxu0 0
    %380 = vmatpush1.bf16.msra.mxu0 %v364
    %381 = vmatprep.subr.bf16.mxu0 0
    %382 = vmatpush1.bf16.msra.mxu0 %v363
    %383 = vmatprep.subr.bf16.mxu0 0
    %384 = vmatpush1.bf16.msra.mxu0 %v362
    %385 = vmatprep.subr.bf16.mxu0 0
    %386 = vmatpush1.bf16.msra.mxu0 %v361
    %387 = vmatprep.subr.bf16.mxu0 0
    %388 = vmatpush1.bf16.msra.mxu0 %v360
    %389 = vmatprep.subr.bf16.mxu0 0
    %390 = vmatpush1.bf16.msra.mxu0 %v359
    %391 = vmatprep.subr.bf16.mxu0 0
    %392 = vmatpush2.bf16.msra.mxu0 0
    %393 = vmatprep.subr.bf16.mxu0 0
    %394 = vmatpush2.bf16.msra.mxu0 0
    %395 = vmatprep.subr.bf16.mxu0 0
    %396 = vmatpush2.bf16.msra.mxu0 0
    %397 = vmatprep.subr.bf16.mxu0 0
    %398 = vmatpush2.bf16.msra.mxu0 0
    %399 = vmatprep.subr.bf16.mxu0 0
    %400 = vmatpush2.bf16.msra.mxu0 0
    %401 = vmatprep.subr.bf16.mxu0 0
    %402 = vmatpush2.bf16.msra.mxu0 0
    %403 = vmatprep.subr.bf16.mxu0 0
    %404 = vmatpush2.bf16.msra.mxu0 0
    %405 = vmatprep.subr.bf16.mxu0 0
    %406 = vmatpush2.bf16.msra.mxu0 0
    %407 = vmatprep.mubr.bf16.mxu0 0
    %408 = vmatmul.mubr.bf16.gmra.mxu0 %v291
    %v409 = vpop.f32.mrf.mxu0
    %v410 = vadd.f32 %v325, %v409
    %v411 = vpop.f32.mrf.mxu0
    %v412 = vpop.f32.mrf.mxu0
    %v413 = vadd.f32 %v325, %v412
    %v414 = vpop.f32.mrf.mxu0
    %415 = vmatprep.mubr.bf16.mxu0 0
    %416 = vmatmul.mubr.bf16.gmra.mxu0 %v292
    %v417 = vpop.f32.mrf.mxu0
    %v418 = vadd.f32 %v325, %v417
    %v419 = vpop.f32.mrf.mxu0
    %v420 = vpop.f32.mrf.mxu0
    %v421 = vadd.f32 %v325, %v420
    %v422 = vpop.f32.mrf.mxu0
    %423 = vmatprep.mubr.bf16.mxu0 0
    %424 = vmatmul.mubr.bf16.gmra.mxu0 %v293
    %v425 = vpop.f32.mrf.mxu0
    %v426 = vadd.f32 %v325, %v425
    %v427 = vpop.f32.mrf.mxu0
    %v428 = vpop.f32.mrf.mxu0
    %v429 = vadd.f32 %v325, %v428
    %v430 = vpop.f32.mrf.mxu0
    %431 = vmatprep.mubr.bf16.mxu0 0
    %432 = vmatmul.mubr.bf16.gmra.mxu0 %v294
    %v433 = vpop.f32.mrf.mxu0
    %v434 = vadd.f32 %v325, %v433
    %v435 = vpop.f32.mrf.mxu0
    %v436 = vpop.f32.mrf.mxu0
    %v437 = vadd.f32 %v325, %v436
    %v438 = vpop.f32.mrf.mxu0
    %439 = vmatprep.mubr.bf16.mxu0 0
    %440 = vmatmul.mubr.bf16.gmra.mxu0 %v295
    %v441 = vpop.f32.mrf.mxu0
    %v442 = vadd.f32 %v325, %v441
    %v443 = vpop.f32.mrf.mxu0
    %v444 = vpop.f32.mrf.mxu0
    %v445 = vadd.f32 %v325, %v444
    %v446 = vpop.f32.mrf.mxu0
    %447 = vmatprep.mubr.bf16.mxu0 0
    %448 = vmatmul.mubr.bf16.gmra.mxu0 %v296
    %v449 = vpop.f32.mrf.mxu0
    %v450 = vadd.f32 %v325, %v449
    %v451 = vpop.f32.mrf.mxu0
    %v452 = vpop.f32.mrf.mxu0
    %v453 = vadd.f32 %v325, %v452
    %v454 = vpop.f32.mrf.mxu0
    %455 = vmatprep.mubr.bf16.mxu0 0
    %456 = vmatmul.mubr.bf16.gmra.mxu0 %v297
    %v457 = vpop.f32.mrf.mxu0
    %v458 = vadd.f32 %v325, %v457
    %v459 = vpop.f32.mrf.mxu0
    %v460 = vpop.f32.mrf.mxu0
    %v461 = vadd.f32 %v325, %v460
    %v462 = vpop.f32.mrf.mxu0
    %463 = vmatprep.mubr.bf16.mxu0 0
    %464 = vmatmul.mubr.bf16.gmra.mxu0 %v298
    %v465 = vpop.f32.mrf.mxu0
    %v466 = vadd.f32 %v325, %v465
    %v467 = vpop.f32.mrf.mxu0
    %v468 = vpop.f32.mrf.mxu0
    %v469 = vadd.f32 %v325, %v468
    %v470 = vpop.f32.mrf.mxu0
    %471 = vmatprep.mubr.bf16.mxu0 0
    %472 = vmatmul.mubr.bf16.gmra.mxu0 %v299
    %v473 = vpop.f32.mrf.mxu0
    %v474 = vadd.f32 %v325, %v473
    %v475 = vpop.f32.mrf.mxu0
    %v476 = vpop.f32.mrf.mxu0
    %v477 = vadd.f32 %v325, %v476
    %v478 = vpop.f32.mrf.mxu0
    %479 = vmatprep.mubr.bf16.mxu0 0
    %480 = vmatmul.mubr.bf16.gmra.mxu0 %v300
    %v481 = vpop.f32.mrf.mxu0
    %v482 = vadd.f32 %v325, %v481
    %v483 = vpop.f32.mrf.mxu0
    %v484 = vpop.f32.mrf.mxu0
    %v485 = vadd.f32 %v325, %v484
    %v486 = vpop.f32.mrf.mxu0
    %487 = vmatprep.mubr.bf16.mxu0 0
    %488 = vmatmul.mubr.bf16.gmra.mxu0 %v301
    %v489 = vpop.f32.mrf.mxu0
    %v490 = vadd.f32 %v325, %v489
    %v491 = vpop.f32.mrf.mxu0
    %v492 = vpop.f32.mrf.mxu0
    %v493 = vadd.f32 %v325, %v492
    %v494 = vpop.f32.mrf.mxu0
    %495 = vmatprep.mubr.bf16.mxu0 0
    %496 = vmatmul.mubr.bf16.gmra.mxu0 %v302
    %v497 = vpop.f32.mrf.mxu0
    %v498 = vadd.f32 %v325, %v497
    %v499 = vpop.f32.mrf.mxu0
    %v500 = vpop.f32.mrf.mxu0
    %v501 = vadd.f32 %v325, %v500
    %v502 = vpop.f32.mrf.mxu0
    %503 = vmatprep.mubr.bf16.mxu0 0
    %504 = vmatmul.mubr.bf16.gmra.mxu0 %v303
    %v505 = vpop.f32.mrf.mxu0
    %v506 = vadd.f32 %v325, %v505
    %v507 = vpop.f32.mrf.mxu0
    %v508 = vpop.f32.mrf.mxu0
    %v509 = vpop.f32.mrf.mxu0
    %510 = vdwg.mxu0
    %v511 = vmax.f32 %v410, 0.0
    %v512 = vmax.f32 %v413, 0.0
    %v513 = vmax.f32 %v418, 0.0
    %v514 = vmax.f32 %v421, 0.0
    %v515 = vmax.f32 %v426, 0.0
    %v516 = vmax.f32 %v429, 0.0
    %v517 = vmax.f32 %v434, 0.0
    %v518 = vmax.f32 %v437, 0.0
    %v519 = vmax.f32 %v442, 0.0
    %v520 = vmax.f32 %v445, 0.0
    %v521 = vmax.f32 %v450, 0.0
    %v522 = vmax.f32 %v453, 0.0
    %v523 = vmax.f32 %v458, 0.0
    %v524 = vmax.f32 %v461, 0.0
    %v525 = vmax.f32 %v466, 0.0
    %v526 = vmax.f32 %v469, 0.0
    %v527 = vmax.f32 %v474, 0.0
    %v528 = vmax.f32 %v477, 0.0
    %v529 = vmax.f32 %v482, 0.0
    %v530 = vmax.f32 %v485, 0.0
    %v531 = vmax.f32 %v490, 0.0
    %v532 = vmax.f32 %v493, 0.0
    %v533 = vmax.f32 %v498, 0.0
    %v534 = vmax.f32 %v501, 0.0
    %v535 = vmax.f32 %v506, 0.0
    %v536 = vpack.c.bf16 %v512, %v511
    %v537 = vpack.c.bf16 %v514, %v513
    %v538 = vpack.c.bf16 %v516, %v515
    %v539 = vpack.c.bf16 %v518, %v517
    %v540 = vpack.c.bf16 %v520, %v519
    %v541 = vpack.c.bf16 %v522, %v521
    %v542 = vpack.c.bf16 %v524, %v523
    %v543 = vpack.c.bf16 %v526, %v525
    %v544 = vpack.c.bf16 %v528, %v527
    %v545 = vpack.c.bf16 %v530, %v529
    %v546 = vpack.c.bf16 %v532, %v531
    %v547 = vpack.c.bf16 %v534, %v533
    %v548 = vpack.c.bf16 %v535, %v535
    %v549 = vld [vmem:[%s5] sm:$0x1]
    %s550 = sld [smem:[#allocation2]]
    %v551 = vstv %s550
    %552 = vmatprep.subr.bf16.mxu0 0
    %553 = vmatpush1.bf16.xpose.msra.mxu0 %v543
    %554 = vmatprep.subr.bf16.mxu0 0
    %555 = vmatpush1.bf16.xpose.msra.mxu0 %v542
    %556 = vmatprep.subr.bf16.mxu0 0
    %557 = vmatpush1.bf16.xpose.msra.mxu0 %v541
    %558 = vmatprep.subr.bf16.mxu0 0
    %559 = vmatpush1.bf16.xpose.msra.mxu0 %v540
    %560 = vmatprep.subr.bf16.mxu0 0
    %561 = vmatpush1.bf16.xpose.msra.mxu0 %v539
    %562 = vmatprep.subr.bf16.mxu0 0
    %563 = vmatpush1.bf16.xpose.msra.mxu0 %v538
    %564 = vmatprep.subr.bf16.mxu0 0
    %565 = vmatpush1.bf16.xpose.msra.mxu0 %v537
    %566 = vmatprep.subr.bf16.mxu0 0
    %567 = vmatpush1.bf16.xpose.msra.mxu0 %v536
    %568 = vmatprep.subr.bf16.mxu0 0
    %569 = vmatpush2.bf16.xpose.msra.mxu0 0
    %570 = vmatprep.subr.bf16.mxu0 0
    %571 = vmatpush2.bf16.xpose.msra.mxu0 0
    %572 = vmatprep.subr.bf16.mxu0 0
    %573 = vmatpush2.bf16.xpose.msra.mxu0 0
    %574 = vmatprep.subr.bf16.mxu0 0
    %575 = vmatpush2.bf16.xpose.msra.mxu0 %v548
    %576 = vmatprep.subr.bf16.mxu0 0
    %577 = vmatpush2.bf16.xpose.msra.mxu0 %v547
    %578 = vmatprep.subr.bf16.mxu0 0
    %579 = vmatpush2.bf16.xpose.msra.mxu0 %v546
    %580 = vmatprep.subr.bf16.mxu0 0
    %581 = vmatpush2.bf16.xpose.msra.mxu0 %v545
    %582 = vmatprep.subr.bf16.mxu0 0
    %583 = vmatpush2.bf16.xpose.msra.mxu0 %v544
    %584 = vmatprep.mubr.bf16.mxu0 0
    %585 = vmatmul.mubr.bf16.gmra.mxu0 %v549
    %v586 = vpop.f32.mrf.mxu0
    %v587 = vadd.f32 %v551, %v586
    %v588 = vpop.f32.mrf.mxu0
    %v589 = vadd.f32 %v551, %v588
    %v590 = vpop.f32.mrf.mxu0
    %v591 = vpop.f32.mrf.mxu0
    %592 = vdwg.mxu0
    %v595 = vcombine.low %v587, %v589
    %v597 = vunpack.c.l.s4 1966171168
    %v598 = vunpack.c.0.s8 %v597
    %v599 = vlaneseq
    %v600 = vshrl.u32 %v599, 7
    %v601 = vsub.s32 %v598, %v600
    %v602 = vrot.slane %v595, %v601
    %v604 = vunpack.c.l.s4 1966171168
    %v605 = vunpack.c.0.s8 %v604
    %v606 = vlaneseq
    %v607 = vshrl.u32 %v606, 7
    %v608 = vsub.s32 %v605, %v607
    %v609 = vrot.slane %v602, %v608
    %v611 = vlaneseq
    %vm612 = vcmp.ge.s32.totalorder %v611, 0
    %vm613 = vcmp.lt.s32.totalorder %v611, 200
    %vm614 = vmand %vm612, %vm613
    %615 = vst.msk [vmem:[#allocation3] sm:$0x3] %vm614, %v609
    // Predicated region
    $region30: #{neural_bandit_forward.1} parent=1 // pred_check
      _
    $region31: #{neural_bandit_forward.1} parent=1 // pred_check_branch
      %617 = sbr.rel (0) target = $region33
    $region32: #{neural_bandit_forward.1} parent=1 // pred_region
      %s619 = ssub.s32 32, 32
      %620 = vsyncadd [#allocation4], %s619
      %s622 = sshll.u32 [#allocation3], 4
      %s623 = int_to_ptr.vmem [resolvable:$true] %s622
      %625 = dma.vmem_to_hbm [thread:$0]  %s623, 32, %s7, [#allocation4]
    $region33: #{neural_bandit_forward.1} parent=1 // pred_fallthru
      _
    // Predicated region
    $region34: #{neural_bandit_forward.1} parent=1 // pred_check
      _
    $region35: #{neural_bandit_forward.1} parent=1 // pred_check_branch
      %627 = sbr.rel (0) target = $region37
    $region36: #{neural_bandit_forward.1} parent=1 // pred_region
      %628 = dma.done [#allocation4], 32
    $region37: #{neural_bandit_forward.1} parent=1 // pred_fallthru
      _
    %629 = vsyncpa [#allocation4], 1

</llo_original>
